<compile_context>
chip_gen: v7x
topology: tpu7x:2x2x1
jax: 0.10.0
libtpu: 0.0.40
codegen_flags: <defaults>
</compile_context>

<pallas_src>
import functools

import jax
import jax.numpy as jnp
import numpy as np
from jax.experimental import pallas as pl
from jax.experimental.pallas import tpu as pltpu


# --------------------------------------------------------------------------- #
# Kernel
# --------------------------------------------------------------------------- #
def _make_fsm_kernel(compute_dtype):
    def kernel(w_ref, a_ref, x_ref, o_ref):
        # w_ref: (Cout, C)  f32, batch-invariant conv weight (VMEM resident)
        # a_ref: (1, 1, C)  f32, per-batch (1 + atten)
        # x_ref: (1, C, T)  input spatial tile (native dtype)
        # o_ref: (1, Cout, T) output tile (out dtype)
        w_scaled = (w_ref[...] * a_ref[0]).astype(compute_dtype)     # (Cout, C)
        x_tile = x_ref[0].astype(compute_dtype)                      # (C, T)
        o_ref[0] = jnp.dot(w_scaled, x_tile,
                           preferred_element_type=jnp.float32).astype(o_ref.dtype)
    return kernel


# --------------------------------------------------------------------------- #
# Tiling / VMEM derivation
# --------------------------------------------------------------------------- #
def _vmem_capacity_bytes():
    try:
        info = pltpu.get_tpu_info()
        cap = int(getattr(info, "vmem_capacity_bytes"))
        if cap > 0:
            return cap
    except Exception:
        pass
    return 64 * 1024 * 1024  # conservative default (v7x per-TC)


def _derive_tiling(C, Cout, HW, x_itemsize, out_itemsize):
    """Pick spatial tile T (multiple of 128, or full HW) and vmem limit from
    the chip's actual VMEM capacity, keeping double-buffered tiles in budget."""
    vmem_cap = _vmem_capacity_bytes()
    # ~45% of VMEM for the streamed, double-buffered x/out tiles.
    budget = min(int(vmem_cap * 0.45), 96 * 1024 * 1024)
    resident = Cout * C * 4 + 2 * C * 4          # w_conv (f32) + (1+atten) blocks
    per_lane = 2 * (C * x_itemsize + Cout * out_itemsize)  # dbl-buffered x + out
    t_budget = max((budget - resident) // max(per_lane, 1), 128)

    if t_budget >= HW:
        T = HW                                    # full extent: always legal
    else:
        T = max((int(t_budget) // 128) * 128, 128)

    vmem_limit = int(min(vmem_cap * 0.75, 100 * 1024 * 1024))
    return T, vmem_limit


# --------------------------------------------------------------------------- #
# Wrapper
# --------------------------------------------------------------------------- #
def feature_selection_module(x_nchw, w_atten, bn_params, w_conv, *,
                             compute_dtype=jnp.bfloat16, out_dtype=None):
    """x_nchw: (N, C, H, W); w_atten: (C, C) [out, in]; bn_params: (4, C) rows =
    [gamma, beta, running_mean, running_var]; w_conv: (Cout, C) [out, in].
    Returns (N, Cout, H, W) in out_dtype (default: x dtype)."""
    N, C, H, W = x_nchw.shape
    Cout = w_conv.shape[0]
    HW = H * W
    if out_dtype is None:
        out_dtype = x_nchw.dtype

    # NCHW-native layout: pure reshape, no transpose, no dtype copy of x.
    x = x_nchw.reshape(N, C, HW)

    # ---- attention branch, hoisted (O(N*C^2), plain JAX, f32) ----
    pooled = jnp.mean(x.astype(jnp.float32), axis=2)                 # (N, C)
    logit = pooled @ jnp.transpose(w_atten).astype(jnp.float32)      # (N, C)
    gamma = bn_params[0].astype(jnp.float32)
    beta = bn_params[1].astype(jnp.float32)
    mean = bn_params[2].astype(jnp.float32)
    var = bn_params[3].astype(jnp.float32)
    bn_scale = gamma * jax.lax.rsqrt(var + jnp.float32(1e-5))
    bn_shift = beta - mean * bn_scale
    atten = jax.nn.sigmoid(logit * bn_scale + bn_shift)              # (N, C)
    atten_p1 = (jnp.float32(1.0) + atten).reshape(N, 1, C)           # (N, 1, C)

    w_f32 = w_conv.astype(jnp.float32)                               # (Cout, C)

    # ---- streamed 1x1-conv matmul over spatial tiles (Pallas) ----
    x_itemsize = jnp.dtype(x.dtype).itemsize
    out_itemsize = jnp.dtype(out_dtype).itemsize
    T, vmem_limit = _derive_tiling(C, Cout, HW, x_itemsize, out_itemsize)
    grid = (N, pl.cdiv(HW, T))

    cost = pl.CostEstimate(
        flops=2 * N * Cout * C * HW,
        transcendentals=0,
        bytes_accessed=(N * C * HW * x_itemsize            # x
                        + Cout * C * 4                     # w_conv
                        + N * C * 4                        # 1 + atten
                        + N * Cout * HW * out_itemsize))   # out

    out = pl.pallas_call(
        _make_fsm_kernel(compute_dtype),
        out_shape=jax.ShapeDtypeStruct((N, Cout, HW), out_dtype),
        grid_spec=pl.GridSpec(
            grid=grid,
            in_specs=[
                # batch-invariant conv weight: VMEM resident for whole launch
                pl.BlockSpec((Cout, C), lambda n, t: (0, 0)),
                # per-batch (1 + atten): tiny, resident across the HW axis
                pl.BlockSpec((1, 1, C), lambda n, t: (n, 0, 0)),
                # streamed spatial tile of x
                pl.BlockSpec((1, C, T), lambda n, t: (n, 0, t)),
            ],
            out_specs=pl.BlockSpec((1, Cout, T), lambda n, t: (n, 0, t)),
        ),
        compiler_params=pltpu.CompilerParams(
            dimension_semantics=("parallel", "parallel"),
            vmem_limit_bytes=vmem_limit),
        cost_estimate=cost,
    )(w_f32, atten_p1, x)

    # (N, Cout, HW) is already NCHW-contiguous: reshape only.
    return out.reshape(N, Cout, H, W)


_fsm_jit = jax.jit(feature_selection_module,
                   static_argnames=("compute_dtype", "out_dtype"))


# --------------------------------------------------------------------------- #
# Reference & test
# --------------------------------------------------------------------------- #
def _xavier_uniform(key, out_ch, in_ch, gain=1.0):
    # matches nn.init.xavier_uniform_ for a 1x1 conv weight (fan_in=in, fan_out=out)
    a = gain * np.sqrt(6.0 / (in_ch + out_ch))
    return jax.random.uniform(key, (out_ch, in_ch), jnp.float32, minval=-a, maxval=a)


def _reference(x, w_atten, bn, w_conv):
    # pure-JAX f32 reference matching the PyTorch forward (eval-mode BN)
    pooled = jnp.mean(x, axis=(2, 3), keepdims=True)                 # (N, C, 1, 1)
    logit = jnp.einsum('oc,nchw->nohw', w_atten, pooled)
    gamma, beta, mean, var = [bn[i].reshape(1, -1, 1, 1) for i in range(4)]
    normed = (logit - mean) / jnp.sqrt(var + 1e-5) * gamma + beta
    atten = jax.nn.sigmoid(normed)
    y = x + x * atten
    return jnp.einsum('oc,nchw->nohw', w_conv, y)


if __name__ == "__main__":
    key = jax.random.PRNGKey(0)
    k_x, k_wa, k_wc = jax.random.split(key, 3)

    N, C, H, W = 2, 4, 16, 16
    out_chan = 8

    x = jax.random.normal(k_x, (N, C, H, W), jnp.float32)
    w_atten = _xavier_uniform(k_wa, C, C)           # conv_atten: (C, C) 1x1, no bias
    w_conv = _xavier_uniform(k_wc, out_chan, C)     # conv:       (Cout, C) 1x1, no bias
    bn_params = jnp.stack([
        jnp.ones((C,), jnp.float32),    # gamma
        jnp.zeros((C,), jnp.float32),   # beta
        jnp.zeros((C,), jnp.float32),   # running_mean
        jnp.ones((C,), jnp.float32),    # running_var
    ], axis=0)

    ref = _reference(x, w_atten, bn_params, w_conv)

    # f32 compute / f32 output path: tight-tolerance parity with PyTorch semantics.
    out_f32 = _fsm_jit(x, w_atten, bn_params, w_conv,
                       compute_dtype=jnp.float32, out_dtype=jnp.float32)
    out_f32 = jax.block_until_ready(out_f32)
    np.testing.assert_allclose(np.asarray(out_f32), np.asarray(ref),
                               rtol=1e-5, atol=1e-5)

    # bf16 compute / bf16 output path (default perf path: MXU rate, half the
    # HBM store traffic): loose tolerance.
    out_bf16 = _fsm_jit(x, w_atten, bn_params, w_conv,
                        compute_dtype=jnp.bfloat16, out_dtype=jnp.bfloat16)
    out_bf16 = jax.block_until_ready(out_bf16)
    np.testing.assert_allclose(np.asarray(out_bf16, dtype=np.float32),
                               np.asarray(ref), rtol=5e-2, atol=5e-2)

    assert out_f32.shape == (N, out_chan, H, W)
    assert out_bf16.shape == (N, out_chan, H, W)
    print("KERNEL_OK")
</pallas_src>

<mosaic_0001>
module attributes {stable_mosaic.version = 11 : i64} {
  func.func @kernel(%arg0: i32, %arg1: i32, %arg2: memref<8x4xf32, #tpu.memory_space<vmem>>, %arg3: memref<1x1x4xf32, #tpu.memory_space<vmem>>, %arg4: memref<1x4x256xf32, #tpu.memory_space<vmem>>, %arg5: memref<1x8x256xf32, #tpu.memory_space<vmem>>) attributes {dimension_semantics = [#tpu.dimension_semantics<parallel>, #tpu.dimension_semantics<parallel>], iteration_bounds = array<i64: 2, 1>, scalar_prefetch = 0 : i64, scratch_operands = 0 : i64, tpu.core_type = #tpu.core_type<tc>, window_params = [{pipeline_mode = #tpu.pipeline_mode<synchronous>, transform_indices = @transform_0, window_bounds = array<i64: 8, 4>}, {transform_indices = @transform_1, window_bounds = array<i64: 1, 1, 4>}, {transform_indices = @transform_2, window_bounds = array<i64: 1, 4, 256>}, {transform_indices = @transform_3, window_bounds = array<i64: 1, 8, 256>}]} {
    %c0 = arith.constant 0 : index
    %c0_0 = arith.constant 0 : index
    %0 = vector.load %arg2[%c0, %c0_0] : memref<8x4xf32, #tpu.memory_space<vmem>>, vector<8x4xf32>
    %c0_1 = arith.constant 0 : index
    %c0_2 = arith.constant 0 : index
    %c0_3 = arith.constant 0 : index
    %1 = vector.load %arg3[%c0_1, %c0_2, %c0_3] : memref<1x1x4xf32, #tpu.memory_space<vmem>>, vector<1x1x4xf32>
    %2 = vector.shape_cast %1 : vector<1x1x4xf32> to vector<1x4xf32>
    %3 = vector.broadcast %2 : vector<1x4xf32> to vector<8x4xf32>
    %4 = arith.mulf %0, %3 : vector<8x4xf32>
    %c0_4 = arith.constant 0 : index
    %c0_5 = arith.constant 0 : index
    %c0_6 = arith.constant 0 : index
    %5 = vector.load %arg4[%c0_4, %c0_5, %c0_6] : memref<1x4x256xf32, #tpu.memory_space<vmem>>, vector<1x4x256xf32>
    %6 = vector.shape_cast %5 : vector<1x4x256xf32> to vector<4x256xf32>
    %cst = arith.constant dense<0.000000e+00> : vector<8x256xf32>
    %7 = tpu.matmul %4, %6, %cst {dimension_numbers = #tpu.dot_dimension_numbers<[1], [0], [0], [1], [0, 0, 1, 1], [], []>} : vector<8x4xf32>, vector<4x256xf32>, vector<8x256xf32> -> vector<8x256xf32>
    %c0_7 = arith.constant 0 : index
    %c0_8 = arith.constant 0 : index
    %c0_9 = arith.constant 0 : index
    %8 = vector.load %arg5[%c0_7, %c0_8, %c0_9] : memref<1x8x256xf32, #tpu.memory_space<vmem>>, vector<1x8x256xf32>
    %9 = vector.shape_cast %8 : vector<1x8x256xf32> to vector<8x256xf32>
    %10 = vector.shape_cast %7 : vector<8x256xf32> to vector<1x8x256xf32>
    tpu.vector_store %arg5[%c0_7, %c0_8, %c0_9], %10 {strides = array<i32>} : memref<1x8x256xf32, #tpu.memory_space<vmem>>, vector<1x8x256xf32>,
    return
  }
  func.func @transform_0(%arg0: i32, %arg1: i32) -> (i32, i32) {
    %c0_i32 = arith.constant 0 : i32
    %c0_i32_0 = arith.constant 0 : i32
    %c0_i32_1 = arith.constant 0 : i32
    return %c0_i32, %c0_i32_0 : i32, i32
  }
  func.func @transform_1(%arg0: i32, %arg1: i32) -> (i32, i32, i32) {
    %c0_i32 = arith.constant 0 : i32
    %c0_i32_0 = arith.constant 0 : i32
    %c0_i32_1 = arith.constant 0 : i32
    return %arg0, %c0_i32, %c0_i32_0 : i32, i32, i32
  }
  func.func @transform_2(%arg0: i32, %arg1: i32) -> (i32, i32, i32) {
    %c0_i32 = arith.constant 0 : i32
    %c0_i32_0 = arith.constant 0 : i32
    return %arg0, %c0_i32, %arg1 : i32, i32, i32
  }
  func.func @transform_3(%arg0: i32, %arg1: i32) -> (i32, i32, i32) {
    %c0_i32 = arith.constant 0 : i32
    %c0_i32_0 = arith.constant 0 : i32
    return %arg0, %c0_i32, %arg1 : i32, i32, i32
  }
}

</mosaic_0001>

<llo_original>
// kernel: feature_selection_module.1
$region0: #{feature_selection_module.1}
  #allocation0 [shape = 'u32[]', space=smem, size = 0x4, offset = 0x4, fixed_abs, tag = 'smem constant byte address 0x4 - core index']
  #allocation1 [shape = 'u32[144,128]{1,0:T(1,128)}', space=vmem, size = 0x12000, scoped, tag = 'internal scratch']
  %s0 = inlined_call_operand.vmem [shape: f32[8,4], index: 0, kind: input, shape index: {}]
  %s1 = inlined_call_operand.vmem [shape: f32[2,1,4], index: 1, kind: input, shape index: {}]
  %s2 = inlined_call_operand.vmem [shape: f32[2,4,256], index: 2, kind: input, shape index: {}]
  %s3 = inlined_call_operand.vmem [shape: f32[2,8,256], index: 3, kind: output, shape index: {}]
  %s4 = sld [smem:[#allocation0]]
  $region45: #{feature_selection_module.1} parent=0
    _
  %s6 = ssub.s32 1, %s4
  %s7 = scalar_select 0, %s6, %s4
  loop: start=0, step=1, limit=4
  $region2: #{feature_selection_module.1} parent=0 // loop_pre_header
    _
  $region3: #{feature_selection_module.1} parent=0 // loop_header
    %s9 = sphi 0, %s13
    %p10 = scmp.ge.s32.totalorder %s9, 4
    %s16 = sphi 0, %s28
    %s17 = sphi 0, %s24
    %s18 = sphi 0, %s16
    %s19 = sphi 0, %s17
    %s20 = sphi 0, %s18
    %s21 = sphi 0, %s19
    %s29 = sphi 0, %s29
    %s31 = sphi 0, %s29
    %s32 = sphi 0, %s31
    %s46 = sphi 0, %s32
    %s52 = sphi 0, %s54
    %s55 = sphi 0, %s52
    %s56 = sphi 0, %s55
    %s72 = sphi 0, %s56
    %s80 = sphi 0, %s82
    %s83 = sphi 0, %s80
    %s84 = sphi 0, %s83
    %s100 = sphi 0, %s84
    %s108 = sphi 0, %s110
    %s111 = sphi 0, %s108
    %s112 = sphi 0, %s111
    %s128 = sphi 0, %s112
  $region4: #{feature_selection_module.1} parent=0 // loop_header_branch
    %12 = sbr.rel (%p10) target = $region8
  $region5: #{feature_selection_module.1} parent=0 // loop_body
    %s14 = ssub.s32 %s9, 1
    %s15 = ssub.s32 %s9, 2
    %s22 = sadd.s32 1, %s17
    %p23 = scmp.ge.s32.totalorder %s22, 1
    %s24 = scalar_select %p23, 0, %s22
    %s25 = sadd.s32 1, %s16
    %s26 = scalar_select %p23, %s25, %s16
    %p27 = scmp.ge.s32.totalorder %s26, 2
    %s28 = scalar_select %p27, 0, %s26
    %s30 = sadd.s32 %s29, 1
    %p33 = scmp.eq.s32.totalorder %s9, 1
    %p34 = scmp.ne.s32.totalorder %s29, %s31
    %p35 = scmp.eq.s32.totalorder %s9, 0
    %p36 = por %p34, %p35
    %p37 = scmp.ne.s32.totalorder %s29, %s31
    %p38 = scmp.eq.s32.totalorder %s14, 1
    %p39 = por %p37, %p38
    %p40 = scmp.ne.s32.totalorder %s31, %s32
    %p41 = scmp.eq.s32.totalorder %s14, 0
    %p42 = por %p40, %p41
    %p43 = scmp.ne.s32.totalorder %s31, %s32
    %p44 = scmp.eq.s32.totalorder %s15, 1
    %p45 = por %p43, %p44
    %p47 = scmp.ne.s32.totalorder %s32, %s46
    %p48 = scmp.eq.s32.totalorder %s15, 0
    %p49 = por %p47, %p48
    %s50 = ssub.s32 %s16, %s28
    %p51 = scmp.eq.s32.totalorder %s50, 0
    %s53 = sadd.s32 %s52, 1
    %s54 = scalar_select %p51, %s52, %s53
    %p57 = pneg %p51
    %p58 = scmp.eq.s32.totalorder %s9, 1
    %p59 = por %p57, %p58
    %p60 = scmp.ne.s32.totalorder %s52, %s55
    %p61 = scmp.eq.s32.totalorder %s9, 0
    %p62 = por %p60, %p61
    %p63 = scmp.ne.s32.totalorder %s52, %s55
    %p64 = scmp.eq.s32.totalorder %s14, 1
    %p65 = por %p63, %p64
    %p66 = scmp.ne.s32.totalorder %s55, %s56
    %p67 = scmp.eq.s32.totalorder %s14, 0
    %p68 = por %p66, %p67
    %p69 = scmp.ne.s32.totalorder %s55, %s56
    %p70 = scmp.eq.s32.totalorder %s15, 1
    %p71 = por %p69, %p70
    %p73 = scmp.ne.s32.totalorder %s56, %s72
    %p74 = scmp.eq.s32.totalorder %s15, 0
    %p75 = por %p73, %p74
    %s76 = ssub.s32 %s16, %s28
    %s77 = ssub.s32 %s17, %s24
    %s78 = sor.u32 %s76, %s77
    %p79 = scmp.eq.s32.totalorder %s78, 0
    %s81 = sadd.s32 %s80, 1
    %s82 = scalar_select %p79, %s80, %s81
    %p85 = pneg %p79
    %p86 = scmp.eq.s32.totalorder %s9, 1
    %p87 = por %p85, %p86
    %p88 = scmp.ne.s32.totalorder %s80, %s83
    %p89 = scmp.eq.s32.totalorder %s9, 0
    %p90 = por %p88, %p89
    %p91 = scmp.ne.s32.totalorder %s80, %s83
    %p92 = scmp.eq.s32.totalorder %s14, 1
    %p93 = por %p91, %p92
    %p94 = scmp.ne.s32.totalorder %s83, %s84
    %p95 = scmp.eq.s32.totalorder %s14, 0
    %p96 = por %p94, %p95
    %p97 = scmp.ne.s32.totalorder %s83, %s84
    %p98 = scmp.eq.s32.totalorder %s15, 1
    %p99 = por %p97, %p98
    %p101 = scmp.ne.s32.totalorder %s84, %s100
    %p102 = scmp.eq.s32.totalorder %s15, 0
    %p103 = por %p101, %p102
    %s104 = ssub.s32 %s16, %s28
    %s105 = ssub.s32 %s17, %s24
    %s106 = sor.u32 %s104, %s105
    %p107 = scmp.eq.s32.totalorder %s106, 0
    %s109 = sadd.s32 %s108, 1
    %s110 = scalar_select %p107, %s108, %s109
    %p113 = pneg %p107
    %p114 = scmp.eq.s32.totalorder %s9, 1
    %p115 = por %p113, %p114
    %p116 = scmp.ne.s32.totalorder %s108, %s111
    %p117 = scmp.eq.s32.totalorder %s9, 0
    %p118 = por %p116, %p117
    %p119 = scmp.ne.s32.totalorder %s108, %s111
    %p120 = scmp.eq.s32.totalorder %s14, 1
    %p121 = por %p119, %p120
    %p122 = scmp.ne.s32.totalorder %s111, %s112
    %p123 = scmp.eq.s32.totalorder %s14, 0
    %p124 = por %p122, %p123
    %p125 = scmp.ne.s32.totalorder %s111, %s112
    %p126 = scmp.eq.s32.totalorder %s15, 1
    %p127 = por %p125, %p126
    %p129 = scmp.ne.s32.totalorder %s112, %s128
    %p130 = scmp.eq.s32.totalorder %s15, 0
    %p131 = por %p129, %p130
    %p132 = scmp.le.s32.totalorder 1, %s9
    %p133 = scmp.lt.s32.totalorder %s9, 3
    %p134 = pnand %p132, %p133
    %p135 = pneg %p134
    // Predicated region
    $region9: #{feature_selection_module.1} parent=5 // pred_check
      _
    $region10: #{feature_selection_module.1} parent=5 // pred_check_branch
      %137 = sbr.rel (%p134) target = $region12
    $region11: #{feature_selection_module.1} parent=5 // pred_region
      %s138 = ssub.s32 %s9, 1
      // Predicated region
      $region13: #{feature_selection_module.1} parent=11 // pred_check
        %p139 = pneg %p42
      $region14: #{feature_selection_module.1} parent=11 // pred_check_branch
        %141 = sbr.rel (%p139) target = $region16
      $region15: #{feature_selection_module.1} parent=11 // pred_region
        _
      $region16: #{feature_selection_module.1} parent=11 // pred_fallthru
        _
    $region12: #{feature_selection_module.1} parent=5 // pred_fallthru
      _
    %p142 = scmp.lt.s32.totalorder %s9, 2
    // Predicated region
    $region17: #{feature_selection_module.1} parent=5 // pred_check
      %p143 = pneg %p142
    $region18: #{feature_selection_module.1} parent=5 // pred_check_branch
      %145 = sbr.rel (%p143) target = $region20
    $region19: #{feature_selection_module.1} parent=5 // pred_region
      // Predicated region
      $region21: #{feature_selection_module.1} parent=19 // pred_check
        %p146 = pneg %p62
      $region22: #{feature_selection_module.1} parent=19 // pred_check_branch
        %148 = sbr.rel (%p146) target = $region24
      $region23: #{feature_selection_module.1} parent=19 // pred_region
        %p149 = scmp.lt.s32.totalorder %s16, 1
        %s150 = scalar_select %p149, %s16, 1
        %s151 = scalar_lea.vmem %s1, %s150
      $region24: #{feature_selection_module.1} parent=19 // pred_fallthru
        _
      // Predicated region
      $region25: #{feature_selection_module.1} parent=19 // pred_check
        %p152 = pneg %p90
      $region26: #{feature_selection_module.1} parent=19 // pred_check_branch
        %154 = sbr.rel (%p152) target = $region28
      $region27: #{feature_selection_module.1} parent=19 // pred_region
        %s155 = smul.u32 2, %s17
        %p156 = scmp.lt.s32.totalorder %s16, 1
        %s157 = scalar_select %p156, %s16, 1
        %p158 = scmp.lt.s32.totalorder %s155, 1
        %s159 = scalar_select %p158, %s155, 1
        %s160 = smul.addr %s157, 2
        %s161 = sadd.s32 %s159, %s160
        %s162 = smul.addr %s161, 4
        %s163 = scalar_lea.vmem %s2, %s162
        %s164 = smul.u32 2, %s17
      $region28: #{feature_selection_module.1} parent=19 // pred_fallthru
        _
    $region20: #{feature_selection_module.1} parent=5 // pred_fallthru
      _
    %p165 = scmp.le.s32.totalorder 1, %s9
    %p166 = scmp.lt.s32.totalorder %s9, 3
    %p167 = pnand %p165, %p166
    %p168 = pneg %p167
    // Predicated region
    $region29: #{feature_selection_module.1} parent=5 // pred_check
      _
    $region30: #{feature_selection_module.1} parent=5 // pred_check_branch
      %170 = sbr.rel (%p167) target = $region32
    $region31: #{feature_selection_module.1} parent=5 // pred_region
      %s171 = ssub.s32 %s9, 1
      %p172 = pneg %p42
      %p173 = pneg %p39
      %p174 = scmp.lt.s32.totalorder %s18, 1
      %s175 = scalar_select %p174, %s18, 1
      %s176 = scalar_lea.vmem %s1, %s175
      %p177 = pneg %p68
      %p178 = pneg %p65
      %s179 = smul.u32 2, %s19
      %p180 = scmp.lt.s32.totalorder %s18, 1
      %s181 = scalar_select %p180, %s18, 1
      %p182 = scmp.lt.s32.totalorder %s179, 1
      %s183 = scalar_select %p182, %s179, 1
      %s184 = smul.addr %s181, 2
      %s185 = sadd.s32 %s183, %s184
      %s186 = smul.addr %s185, 4
      %s187 = scalar_lea.vmem %s2, %s186
      %p188 = pneg %p96
      %p189 = pneg %p93
      %p190 = pneg %p124
      %p191 = pneg %p121
      %s192 = smul.u32 2, %s19
      %p193 = scmp.lt.s32.totalorder %s18, 1
      %s194 = scalar_select %p193, %s18, 1
      %p195 = scmp.lt.s32.totalorder %s192, 1
      %s196 = scalar_select %p195, %s192, 1
      %s197 = smul.addr %s194, 2
      %s198 = sadd.s32 %s196, %s197
      %s199 = smul.addr %s198, 8
      %s200 = scalar_lea.vmem %s3, %s199
      %p201 = scmp.lt.s32.totalorder %s18, 1
      %s202 = scalar_select %p201, %s18, 1
      %s203 = scalar_lea.vmem %s1, %s202
      %s204 = smul.u32 2, %s19
      %p205 = scmp.lt.s32.totalorder %s18, 1
      %s206 = scalar_select %p205, %s18, 1
      %p207 = scmp.lt.s32.totalorder %s204, 1
      %s208 = scalar_select %p207, %s204, 1
      %s209 = smul.addr %s206, 2
      %s210 = sadd.s32 %s208, %s209
      %s211 = smul.addr %s210, 4
      %s212 = scalar_lea.vmem %s2, %s211
      %s213 = smul.u32 2, %s19
      %s214 = smul.u32 2, %s19
      %p215 = scmp.lt.s32.totalorder %s18, 1
      %s216 = scalar_select %p215, %s18, 1
      %p217 = scmp.lt.s32.totalorder %s214, 1
      %s218 = scalar_select %p217, %s214, 1
      %s219 = smul.addr %s216, 2
      %s220 = sadd.s32 %s218, %s219
      %s221 = smul.addr %s220, 8
      %s222 = scalar_lea.vmem %s3, %s221
      %s223 = smul.u32 2, %s19
      %v224 = vld [vmem:[%s0] sm:$0xff]
      %v225 = vld [vmem:[%s203] sm:$0x1]
      %v227 = vlaneseq
      %v228 = vshrl.u32 %v227, 7
      %v229 = vsub.s32 0, %v228
      %v230 = vrot.slane %v225, %v229
      %v232 = vmul.f32 %v224, %v230
      %v233 = vld [vmem:[%s212] sm:$0xff]
      %v235 = vcombine.high %v233, %v233
      %vm236 = vcmask 31744
      %v238 = vsel %vm236, %v232, 0
      %vm240 = vcmask 1043456
      %v241 = vsel %vm240, %v233, 0
      %v243 = vsel %vm240, %v235, 0
      %245 = vmatprep.subr.mxu0 %v243
      %246 = vmatpush1.msra.mxu0 %v241
      %247 = vmatprep.subr.mxu0 0.0
      %248 = vmatpush1.msra.mxu0 0.0
      %249 = vmatprep.subr.mxu0 0.0
      %250 = vmatpush1.msra.mxu0 0.0
      %251 = vmatprep.subr.mxu0 0.0
      %252 = vmatpush1.msra.mxu0 0.0
      %253 = vmatprep.subr.mxu0 0.0
      %254 = vmatpush1.msra.mxu0 0.0
      %255 = vmatprep.subr.mxu0 0.0
      %256 = vmatpush1.msra.mxu0 0.0
      %257 = vmatprep.subr.mxu0 0.0
      %258 = vmatpush1.msra.mxu0 0.0
      %259 = vmatprep.subr.mxu0 0.0
      %260 = vmatpush1.msra.mxu0 0.0
      %261 = vmatprep.subr.mxu0 0.0
      %262 = vmatpush1.msra.mxu0 0.0
      %263 = vmatprep.subr.mxu0 0.0
      %264 = vmatpush1.msra.mxu0 0.0
      %265 = vmatprep.subr.mxu0 0.0
      %266 = vmatpush1.msra.mxu0 0.0
      %267 = vmatprep.subr.mxu0 0.0
      %268 = vmatpush1.msra.mxu0 0.0
      %269 = vmatprep.subr.mxu0 0.0
      %270 = vmatpush1.msra.mxu0 0.0
      %271 = vmatprep.subr.mxu0 0.0
      %272 = vmatpush1.msra.mxu0 0.0
      %273 = vmatprep.subr.mxu0 0.0
      %274 = vmatpush1.msra.mxu0 0.0
      %275 = vmatprep.subr.mxu0 0.0
      %276 = vmatpush1.msra.mxu0 0.0
      %277 = vmatprep.subr.mxu0 0.0
      %278 = vmatpush1.msra.mxu0 0.0
      %279 = vmatprep.subr.mxu0 0.0
      %280 = vmatpush1.msra.mxu0 0.0
      %281 = vmatprep.subr.mxu0 0.0
      %282 = vmatpush1.msra.mxu0 0.0
      %283 = vmatprep.subr.mxu0 0.0
      %284 = vmatpush1.msra.mxu0 0.0
      %285 = vmatprep.subr.mxu0 0.0
      %286 = vmatpush1.msra.mxu0 0.0
      %287 = vmatprep.subr.mxu0 0.0
      %288 = vmatpush1.msra.mxu0 0.0
      %289 = vmatprep.subr.mxu0 0.0
      %290 = vmatpush1.msra.mxu0 0.0
      %291 = vmatprep.subr.mxu0 0.0
      %292 = vmatpush1.msra.mxu0 0.0
      %293 = vmatprep.subr.mxu0 0.0
      %294 = vmatpush1.msra.mxu0 0.0
      %295 = vmatprep.subr.mxu0 0.0
      %296 = vmatpush1.msra.mxu0 0.0
      %297 = vmatprep.subr.mxu0 0.0
      %298 = vmatpush1.msra.mxu0 0.0
      %299 = vmatprep.subr.mxu0 0.0
      %300 = vmatpush1.msra.mxu0 0.0
      %301 = vmatprep.subr.mxu0 0.0
      %302 = vmatpush1.msra.mxu0 0.0
      %303 = vmatprep.subr.mxu0 0.0
      %304 = vmatpush1.msra.mxu0 0.0
      %305 = vmatprep.subr.mxu0 0.0
      %306 = vmatpush1.msra.mxu0 0.0
      %307 = vmatprep.subr.mxu0 0.0
      %308 = vmatpush1.msra.mxu0 0.0
      %309 = vmatprep.mubr.f32.mxu0 0.0
      %310 = vmatmul.mubr.f32.gmra.mrb[0].mxu0 %v238
      %v311 = vpop.f32.mrb[0].mxu0
      %v312 = vadd.f32 0.0, %v311
      %v313 = vpop.f32.mrb[0].mxu0
      %v314 = vadd.f32 0.0, %v313
      %315 = vdwg.mxu0
      %316 = vst [vmem:[%s222] sm:$0xff] %v312
      %317 = vst [vmem:[%s222 + $0x8] sm:$0xff] %v314
      %s318 = smul.u32 2, %s19
      %p319 = scmp.lt.s32.totalorder %s18, 1
      %s320 = scalar_select %p319, %s18, 1
      %p321 = scmp.lt.s32.totalorder %s318, 1
      %s322 = scalar_select %p321, %s318, 1
      %s323 = smul.addr %s320, 2
      %s324 = sadd.s32 %s322, %s323
      %s325 = smul.addr %s324, 8
      %s326 = scalar_lea.vmem %s3, %s325
      // Predicated region
      $region33: #{feature_selection_module.1} parent=31 // pred_check
        %p327 = pneg %p121
      $region34: #{feature_selection_module.1} parent=31 // pred_check_branch
        %329 = sbr.rel (%p327) target = $region36
      $region35: #{feature_selection_module.1} parent=31 // pred_region
        %s330 = smul.u32 2, %s19
      $region36: #{feature_selection_module.1} parent=31 // pred_fallthru
        _
    $region32: #{feature_selection_module.1} parent=5 // pred_fallthru
      _
    %p331 = scmp.le.s32.totalorder 2, %s9
    // Predicated region
    $region37: #{feature_selection_module.1} parent=5 // pred_check
      %p332 = pneg %p331
    $region38: #{feature_selection_module.1} parent=5 // pred_check_branch
      %334 = sbr.rel (%p332) target = $region40
    $region39: #{feature_selection_module.1} parent=5 // pred_region
      %s335 = ssub.s32 %s9, 2
      // Predicated region
      $region41: #{feature_selection_module.1} parent=39 // pred_check
        %p336 = pneg %p127
      $region42: #{feature_selection_module.1} parent=39 // pred_check_branch
        %338 = sbr.rel (%p336) target = $region44
      $region43: #{feature_selection_module.1} parent=39 // pred_region
        %s339 = smul.u32 2, %s21
        %p340 = scmp.lt.s32.totalorder %s20, 1
        %s341 = scalar_select %p340, %s20, 1
        %p342 = scmp.lt.s32.totalorder %s339, 1
        %s343 = scalar_select %p342, %s339, 1
        %s344 = smul.addr %s341, 2
        %s345 = sadd.s32 %s343, %s344
        %s346 = smul.addr %s345, 8
        %s347 = scalar_lea.vmem %s3, %s346
      $region44: #{feature_selection_module.1} parent=39 // pred_fallthru
        _
    $region40: #{feature_selection_module.1} parent=5 // pred_fallthru
      _
  $region6: #{feature_selection_module.1} parent=0 // loop_footer
    %s13 = sadd.s32 1, %s9
  $region7: #{feature_selection_module.1} parent=0 // loop_footer_branch
    %8 = sbr.rel target = $region3
  $region8: #{feature_selection_module.1} parent=0 // loop_exit
    _

</llo_original>
